<compile_context>
chip_gen: v7x
topology: tpu7x:2x2x1
jax: 0.10.0
libtpu: 0.0.40
codegen_flags: <defaults>
</compile_context>

<pallas_src>
import jax
import jax.numpy as jnp
from jax.experimental import pallas as pl
from jax.experimental.pallas import tpu as pltpu

# deterministic "parameters" of the loss (no learned weights in this module)
POS_MINE_MARGIN = 0.2   # PairMarginMiner pos_margin
NEG_MINE_MARGIN = 0.8   # PairMarginMiner neg_margin
POS_LOSS_MARGIN = 0.0   # ContrastiveLoss pos_margin
NEG_LOSS_MARGIN = 1.0   # ContrastiveLoss neg_margin


def _jde_group_kernel(emb_ref, code_col_ref, code_row_ref, seg_ref, out_ref):
    """One grid step = one group of G frame-pairs stacked along the sublane axis.

    emb_ref      : (GN, Cp) bf16  gathered embeddings (G pairs x Np padded slots, C padded to 128)
    code_col_ref : (GN, 2)  i32   lane 0 = pair code, lane 1 = object id  (column orientation)
    code_row_ref : (2, GN)  i32   row  0 = pair code, row  1 = object id  (row orientation)
    seg_ref      : (G, GN)  f32   grid-invariant: seg[g, i] = 1 iff slot i belongs to local pair g
    out_ref      : (G, 128) f32   lane 0 = loss, lane 1 = mined-pos count, lane 2 = mined-neg count
    """
    gn = emb_ref.shape[0]
    g = out_ref.shape[0]

    # --- L2-normalize embeddings (LpDistance default); norm in f32, MXU input in bf16 ---
    e = emb_ref[...].astype(jnp.float32)
    inv_norm = jax.lax.rsqrt(jnp.sum(e * e, axis=1, keepdims=True) + 1e-12)
    en = (e * inv_norm).astype(jnp.bfloat16)

    # --- pairwise squared L2 distance on normalized embeddings (bf16 MXU, f32 accumulate) ---
    sim = jax.lax.dot_general(en, en, (((1,), (1,)), ((), ())),
                              preferred_element_type=jnp.float32)      # (GN, GN)
    d2 = jnp.maximum(2.0 - 2.0 * sim, 0.0)
    d = jnp.sqrt(d2)   # forward-only; add an eps before sqrt if this is ever differentiated

    # --- pair structure (invalid / padded slots carry unique pair codes -> never match) ---
    pid_c = code_col_ref[:, 0:1]          # (GN, 1)
    oid_c = code_col_ref[:, 1:2]
    pid_r = code_row_ref[0:1, :]          # (1, GN)
    oid_r = code_row_ref[1:2, :]

    same_pair = pid_c == pid_r
    same_obj = oid_c == oid_r
    off_diag = (jax.lax.broadcasted_iota(jnp.int32, (gn, gn), 0)
                != jax.lax.broadcasted_iota(jnp.int32, (gn, gn), 1))

    # --- fused miner (PairMarginMiner, thresholds on squared distance) + ContrastiveLoss ---
    pos_mask = same_pair & same_obj & off_diag & (d2 > POS_MINE_MARGIN * POS_MINE_MARGIN)
    neg_mask = same_pair & jnp.logical_not(same_obj) & (d2 < NEG_MINE_MARGIN * NEG_MINE_MARGIN)

    zero = jnp.zeros_like(d)
    # Mining margins guarantee strictly positive mined terms (pos: d > 0.2 >= pos_loss_margin,
    # neg: d < 0.8 < neg_loss_margin), so no relu is needed and mean-over-mined == AvgNonZeroReducer.
    # Row-reduce each (GN,GN) term to (GN,1) immediately so the big temporaries die early.
    pos_sum = jnp.sum(jnp.where(pos_mask, d - POS_LOSS_MARGIN, zero), axis=1, keepdims=True)
    neg_sum = jnp.sum(jnp.where(neg_mask, NEG_LOSS_MARGIN - d, zero), axis=1, keepdims=True)
    pos_cnt = jnp.sum(jnp.where(pos_mask, 1.0, 0.0), axis=1, keepdims=True)
    neg_cnt = jnp.sum(jnp.where(neg_mask, 1.0, 0.0), axis=1, keepdims=True)

    # --- single tiny segment-reduction matmul: (G, GN) @ (GN, 4) ---
    lane4 = jax.lax.broadcasted_iota(jnp.int32, (gn, 4), 1)
    stacked = (jnp.where(lane4 == 0, pos_sum, 0.0)
               + jnp.where(lane4 == 1, neg_sum, 0.0)
               + jnp.where(lane4 == 2, pos_cnt, 0.0)
               + jnp.where(lane4 == 3, neg_cnt, 0.0))                  # (GN, 4)
    per_pair = jnp.dot(seg_ref[...], stacked,
                       preferred_element_type=jnp.float32)             # (G, 4)

    p_sum = per_pair[:, 0:1]
    n_sum = per_pair[:, 1:2]
    p_cnt = per_pair[:, 2:3]
    n_cnt = per_pair[:, 3:4]

    # mean over mined pairs (== AvgNonZeroReducer for these margins); 0 if nothing mined
    loss = p_sum / jnp.maximum(p_cnt, 1.0) + n_sum / jnp.maximum(n_cnt, 1.0)   # (G, 1)

    # --- one lane-dense output store ---
    lane = jax.lax.broadcasted_iota(jnp.int32, (g, 128), 1)
    out_ref[...] = (jnp.where(lane == 0, loss, 0.0)
                    + jnp.where(lane == 1, p_cnt, 0.0)
                    + jnp.where(lane == 2, n_cnt, 0.0))


def _round_up(x, m):
    return (x + m - 1) // m * m


def jde_loss(appearance_embedding, mask, ind, obj_id):
    """Forward pass of JDELoss.

    appearance_embedding: (B, C, H, W) NCHW; mask / ind / obj_id: (B, max_objects).
    Returns (loss_vec: (B//2,) f32 per-pair-batch losses, num_pos: i32, num_neg: i32).
    The torch module returns a Python list of per-pair losses; consume the array directly on the
    hot path (`list(loss_vec)` reproduces the list API if a caller really needs it).
    """
    B, C, H, W = appearance_embedding.shape
    M = mask.shape[1]
    assert B % 2 == 0, "batch must consist of frame pairs"
    Bp = B // 2
    HW = H * W
    N0 = 2 * M

    # --- _transpose_and_gather_feat: gather only the N needed embeddings (N*C HBM traffic) ---
    # TODO(synk): verify this gather's HLO on the target topology; if XLA lowers the minor-axis
    # gather to a slow dynamic-slice loop / one-hot matmul, move it into a Pallas kernel
    # (scalar-prefetched `ind` in SMEM + per-index DMA row gather).
    feat = appearance_embedding.reshape(B, C, HW)                     # free reshape of NCHW
    idx = jnp.clip(ind.astype(jnp.int32), 0, HW - 1)[:, None, :]      # (B, 1, M)
    idx = jnp.broadcast_to(idx, (B, C, M))
    gathered = jnp.take_along_axis(feat, idx, axis=2)                 # (B, C, M)
    emb = jnp.transpose(gathered, (0, 2, 1)).astype(jnp.bfloat16)     # (B, M, C) bf16 -> HBM/VMEM

    # --- pair-batch layout: frame-0 objects then frame-1 objects (matches torch.cat order) ---
    emb = emb.reshape(Bp, N0, C)
    msk = mask.reshape(Bp, N0) > 0
    oid = obj_id.reshape(Bp, N0).astype(jnp.int32)

    # --- TPU-friendly padding / grouping ---
    Np = _round_up(N0, 8)                 # object slots per pair -> sublane multiple
    Cp = _round_up(C, 128)                # channel axis -> lane-dense
    # Pairs per grid step: aim for GN ~ 256 (one MXU tile on v6e/v7x, two on v5e), but cap G so
    # the "parallel" grid axis keeps >= 2 steps whenever Bp >= 2 (both v7x TensorCores get work).
    G = max(1, min(max(1, 256 // Np), Bp, max(1, (Bp + 1) // 2)))
    Bpp = _round_up(Bp, G)                # pad pair count to a multiple of G (dummy pairs masked)
    n_groups = Bpp // G
    GN = G * Np

    emb = jnp.pad(emb, ((0, Bpp - Bp), (0, Np - N0), (0, Cp - C)))
    msk = jnp.pad(msk, ((0, Bpp - Bp), (0, Np - N0)))
    oid = jnp.pad(oid, ((0, Bpp - Bp), (0, Np - N0)))

    # pair code: global pair index for valid slots, unique negative for invalid / padded slots
    slot = jnp.arange(Bpp * Np, dtype=jnp.int32).reshape(Bpp, Np)
    pair_idx = jnp.arange(Bpp, dtype=jnp.int32)[:, None]
    pid = jnp.where(msk, pair_idx, -(slot + 1)).astype(jnp.int32)

    emb_g = emb.reshape(n_groups, GN, Cp)
    pid_g = pid.reshape(n_groups, GN)
    oid_g = oid.reshape(n_groups, GN)
    code_col = jnp.stack([pid_g, oid_g], axis=2)   # (n_groups, GN, 2)
    code_row = jnp.stack([pid_g, oid_g], axis=1)   # (n_groups, 2, GN)

    # grid-invariant segment matrix: stays resident in VMEM after step 0
    seg = (jnp.arange(G, dtype=jnp.int32)[:, None]
           == (jnp.arange(GN, dtype=jnp.int32) // Np)[None, :]).astype(jnp.float32)

    out = pl.pallas_call(
        _jde_group_kernel,
        grid=(n_groups,),
        in_specs=[
            pl.BlockSpec((None, GN, Cp), lambda i: (i, 0, 0)),
            pl.BlockSpec((None, GN, 2), lambda i: (i, 0, 0)),
            pl.BlockSpec((None, 2, GN), lambda i: (i, 0, 0)),
            pl.BlockSpec((G, GN), lambda i: (0, 0)),            # grid-invariant -> one DMA total
        ],
        out_specs=pl.BlockSpec((None, G, 128), lambda i: (i, 0, 0)),
        out_shape=jax.ShapeDtypeStruct((n_groups, G, 128), jnp.float32),
        compiler_params=pltpu.CompilerParams(
            dimension_semantics=("parallel",)),   # independent pair groups -> both TCs on v7x
    )(emb_g, code_col, code_row, seg)

    out = out.reshape(Bpp, 128)
    loss_vec = out[:Bp, 0]                               # (Bp,) per-pair-batch losses
    # counts include both (i,j) and (j,i) orderings, matching pytorch-metric-learning's miner;
    # dummy / padded pairs contribute exactly 0.
    num_pos = jnp.sum(out[:, 1]).astype(jnp.int32)
    num_neg = jnp.sum(out[:, 2]).astype(jnp.int32)
    return loss_vec, num_pos, num_neg


if __name__ == "__main__":
    key = jax.random.PRNGKey(0)
    k1, k2, k3, k4 = jax.random.split(key, 4)

    B, C, H, W, M = 4, 32, 16, 16, 8   # B = 2 frame pairs, embedding_dim = 32
    appearance = jax.random.normal(k1, (B, C, H, W), dtype=jnp.float32)
    ind = jax.random.randint(k2, (B, M), 0, H * W, dtype=jnp.int32)
    mask = (jax.random.uniform(k3, (B, M)) > 0.3).astype(jnp.float32)
    obj_id = jax.random.randint(k4, (B, M), 0, 6, dtype=jnp.int32)

    loss_vec, num_pos, num_neg = jax.jit(jde_loss)(appearance, mask, ind, obj_id)
    jax.block_until_ready(loss_vec)
    jax.block_until_ready(num_pos)
    jax.block_until_ready(num_neg)
    print("KERNEL_OK")
</pallas_src>

<mosaic_0001>
module attributes {stable_mosaic.version = 11 : i64} {
  func.func @_jde_group_kernel(%arg0: i32, %arg1: memref<1x16x128xbf16, #tpu.memory_space<vmem>>, %arg2: memref<1x16x2xi32, #tpu.memory_space<vmem>>, %arg3: memref<1x2x16xi32, #tpu.memory_space<vmem>>, %arg4: memref<1x16xf32, #tpu.memory_space<vmem>>, %arg5: memref<1x1x128xf32, #tpu.memory_space<vmem>>) attributes {dimension_semantics = [#tpu.dimension_semantics<parallel>], iteration_bounds = array<i64: 2>, scalar_prefetch = 0 : i64, scratch_operands = 0 : i64, tpu.core_type = #tpu.core_type<tc>, window_params = [{transform_indices = @transform_0, window_bounds = array<i64: 1, 16, 128>}, {transform_indices = @transform_1, window_bounds = array<i64: 1, 16, 2>}, {transform_indices = @transform_2, window_bounds = array<i64: 1, 2, 16>}, {pipeline_mode = #tpu.pipeline_mode<synchronous>, transform_indices = @transform_3, window_bounds = array<i64: 1, 16>}, {transform_indices = @transform_4, window_bounds = array<i64: 1, 1, 128>}]} {
    %c0 = arith.constant 0 : index
    %c0_0 = arith.constant 0 : index
    %c0_1 = arith.constant 0 : index
    %0 = vector.load %arg1[%c0, %c0_0, %c0_1] : memref<1x16x128xbf16, #tpu.memory_space<vmem>>, vector<1x16x128xbf16>
    %1 = vector.shape_cast %0 : vector<1x16x128xbf16> to vector<16x128xbf16>
    %2 = arith.extf %1 : vector<16x128xbf16> to vector<16x128xf32>
    %3 = arith.mulf %2, %2 : vector<16x128xf32>
    %cst = arith.constant dense<0.000000e+00> : vector<16xf32>
    %4 = vector.multi_reduction <add>, %3, %cst [1] : vector<16x128xf32> to vector<16xf32>
    %5 = vector.shape_cast %4 : vector<16xf32> to vector<16x1xf32>
    %cst_2 = arith.constant 9.99999996E-13 : f32
    %6 = vector.broadcast %cst_2 : f32 to vector<16x1xf32>
    %7 = arith.addf %5, %6 : vector<16x1xf32>
    %8 = math.rsqrt %7 : vector<16x1xf32>
    %9 = vector.broadcast %8 : vector<16x1xf32> to vector<16x128xf32>
    %10 = arith.mulf %2, %9 : vector<16x128xf32>
    %11 = arith.truncf %10 : vector<16x128xf32> to vector<16x128xbf16>
    %cst_3 = arith.constant dense<0.000000e+00> : vector<16x16xf32>
    %12 = tpu.matmul %11, %11, %cst_3 {dimension_numbers = #tpu.dot_dimension_numbers<[1], [1], [0], [0], [0, 0, 1, 0], [], []>} : vector<16x128xbf16>, vector<16x128xbf16>, vector<16x16xf32> -> vector<16x16xf32>
    %cst_4 = arith.constant 2.000000e+00 : f32
    %13 = vector.broadcast %cst_4 : f32 to vector<16x16xf32>
    %14 = arith.mulf %13, %12 : vector<16x16xf32>
    %cst_5 = arith.constant 2.000000e+00 : f32
    %15 = vector.broadcast %cst_5 : f32 to vector<16x16xf32>
    %16 = arith.subf %15, %14 : vector<16x16xf32>
    %cst_6 = arith.constant 0.000000e+00 : f32
    %17 = vector.broadcast %cst_6 : f32 to vector<16x16xf32>
    %18 = arith.maximumf %16, %17 : vector<16x16xf32>
    %19 = math.sqrt %18 : vector<16x16xf32>
    %c0_7 = arith.constant 0 : index
    %c0_8 = arith.constant 0 : index
    %c0_9 = arith.constant 0 : index
    %20 = vector.load %arg2[%c0_7, %c0_8, %c0_9] : memref<1x16x2xi32, #tpu.memory_space<vmem>>, vector<1x16x1xi32>
    %21 = vector.shape_cast %20 : vector<1x16x1xi32> to vector<16x1xi32>
    %c0_10 = arith.constant 0 : index
    %c0_11 = arith.constant 0 : index
    %c1 = arith.constant 1 : index
    %22 = vector.load %arg2[%c0_10, %c0_11, %c1] : memref<1x16x2xi32, #tpu.memory_space<vmem>>, vector<1x16x1xi32>
    %23 = vector.shape_cast %22 : vector<1x16x1xi32> to vector<16x1xi32>
    %c0_12 = arith.constant 0 : index
    %c0_13 = arith.constant 0 : index
    %c0_14 = arith.constant 0 : index
    %24 = vector.load %arg3[%c0_12, %c0_13, %c0_14] : memref<1x2x16xi32, #tpu.memory_space<vmem>>, vector<1x1x16xi32>
    %25 = vector.shape_cast %24 : vector<1x1x16xi32> to vector<1x16xi32>
    %c0_15 = arith.constant 0 : index
    %c1_16 = arith.constant 1 : index
    %c0_17 = arith.constant 0 : index
    %26 = vector.load %arg3[%c0_15, %c1_16, %c0_17] : memref<1x2x16xi32, #tpu.memory_space<vmem>>, vector<1x1x16xi32>
    %27 = vector.shape_cast %26 : vector<1x1x16xi32> to vector<1x16xi32>
    %28 = vector.broadcast %21 : vector<16x1xi32> to vector<16x16xi32>
    %29 = vector.broadcast %25 : vector<1x16xi32> to vector<16x16xi32>
    %30 = arith.cmpi eq, %28, %29 : vector<16x16xi32>
    %31 = vector.broadcast %23 : vector<16x1xi32> to vector<16x16xi32>
    %32 = vector.broadcast %27 : vector<1x16xi32> to vector<16x16xi32>
    %33 = arith.cmpi eq, %31, %32 : vector<16x16xi32>
    %34 = tpu.iota {dimensions = array<i32: 0>} : vector<16x16xi32>
    %35 = tpu.iota {dimensions = array<i32: 1>} : vector<16x16xi32>
    %36 = arith.cmpi ne, %34, %35 : vector<16x16xi32>
    %37 = arith.andi %30, %33 : vector<16x16xi1>
    %38 = arith.andi %37, %36 : vector<16x16xi1>
    %cst_18 = arith.constant 4.000000e-02 : f32
    %39 = vector.broadcast %cst_18 : f32 to vector<16x16xf32>
    %40 = arith.cmpf ogt, %18, %39 : vector<16x16xf32>
    %41 = arith.andi %38, %40 : vector<16x16xi1>
    %cst_19 = arith.constant dense<true> : vector<16x16xi1>
    %42 = arith.xori %33, %cst_19 : vector<16x16xi1>
    %43 = arith.andi %30, %42 : vector<16x16xi1>
    %cst_20 = arith.constant 6.400000e-01 : f32
    %44 = vector.broadcast %cst_20 : f32 to vector<16x16xf32>
    %45 = arith.cmpf olt, %18, %44 : vector<16x16xf32>
    %46 = arith.andi %43, %45 : vector<16x16xi1>
    %cst_21 = arith.constant 0.000000e+00 : f32
    %47 = vector.broadcast %cst_21 : f32 to vector<16x16xf32>
    %cst_22 = arith.constant 0.000000e+00 : f32
    %48 = vector.broadcast %cst_22 : f32 to vector<16x16xf32>
    %49 = arith.subf %19, %48 : vector<16x16xf32>
    %50 = arith.select %41, %49, %47 : vector<16x16xi1>, vector<16x16xf32>
    %cst_23 = arith.constant dense<0.000000e+00> : vector<16xf32>
    %51 = vector.multi_reduction <add>, %50, %cst_23 [1] : vector<16x16xf32> to vector<16xf32>
    %52 = vector.shape_cast %51 : vector<16xf32> to vector<16x1xf32>
    %cst_24 = arith.constant 1.000000e+00 : f32
    %53 = vector.broadcast %cst_24 : f32 to vector<16x16xf32>
    %54 = arith.subf %53, %19 : vector<16x16xf32>
    %55 = arith.select %46, %54, %47 : vector<16x16xi1>, vector<16x16xf32>
    %cst_25 = arith.constant dense<0.000000e+00> : vector<16xf32>
    %56 = vector.multi_reduction <add>, %55, %cst_25 [1] : vector<16x16xf32> to vector<16xf32>
    %57 = vector.shape_cast %56 : vector<16xf32> to vector<16x1xf32>
    %cst_26 = arith.constant 1.000000e+00 : f32
    %cst_27 = arith.constant 0.000000e+00 : f32
    %58 = vector.broadcast %cst_26 : f32 to vector<16x16xf32>
    %59 = vector.broadcast %cst_27 : f32 to vector<16x16xf32>
    %60 = arith.select %41, %58, %59 : vector<16x16xi1>, vector<16x16xf32>
    %cst_28 = arith.constant dense<0.000000e+00> : vector<16xf32>
    %61 = vector.multi_reduction <add>, %60, %cst_28 [1] : vector<16x16xf32> to vector<16xf32>
    %62 = vector.shape_cast %61 : vector<16xf32> to vector<16x1xf32>
    %cst_29 = arith.constant 1.000000e+00 : f32
    %cst_30 = arith.constant 0.000000e+00 : f32
    %63 = vector.broadcast %cst_29 : f32 to vector<16x16xf32>
    %64 = vector.broadcast %cst_30 : f32 to vector<16x16xf32>
    %65 = arith.select %46, %63, %64 : vector<16x16xi1>, vector<16x16xf32>
    %cst_31 = arith.constant dense<0.000000e+00> : vector<16xf32>
    %66 = vector.multi_reduction <add>, %65, %cst_31 [1] : vector<16x16xf32> to vector<16xf32>
    %67 = vector.shape_cast %66 : vector<16xf32> to vector<16x1xf32>
    %68 = tpu.iota {dimensions = array<i32: 1>} : vector<16x4xi32>
    %c0_i32 = arith.constant 0 : i32
    %69 = vector.broadcast %c0_i32 : i32 to vector<16x4xi32>
    %70 = arith.cmpi eq, %68, %69 : vector<16x4xi32>
    %cst_32 = arith.constant 0.000000e+00 : f32
    %71 = vector.shape_cast %52 : vector<16x1xf32> to vector<16x1xf32>
    %72 = vector.broadcast %71 : vector<16x1xf32> to vector<16x4xf32>
    %73 = vector.broadcast %cst_32 : f32 to vector<16x4xf32>
    %74 = arith.select %70, %72, %73 : vector<16x4xi1>, vector<16x4xf32>
    %c1_i32 = arith.constant 1 : i32
    %75 = vector.broadcast %c1_i32 : i32 to vector<16x4xi32>
    %76 = arith.cmpi eq, %68, %75 : vector<16x4xi32>
    %cst_33 = arith.constant 0.000000e+00 : f32
    %77 = vector.shape_cast %57 : vector<16x1xf32> to vector<16x1xf32>
    %78 = vector.broadcast %77 : vector<16x1xf32> to vector<16x4xf32>
    %79 = vector.broadcast %cst_33 : f32 to vector<16x4xf32>
    %80 = arith.select %76, %78, %79 : vector<16x4xi1>, vector<16x4xf32>
    %81 = arith.addf %74, %80 : vector<16x4xf32>
    %c2_i32 = arith.constant 2 : i32
    %82 = vector.broadcast %c2_i32 : i32 to vector<16x4xi32>
    %83 = arith.cmpi eq, %68, %82 : vector<16x4xi32>
    %cst_34 = arith.constant 0.000000e+00 : f32
    %84 = vector.shape_cast %62 : vector<16x1xf32> to vector<16x1xf32>
    %85 = vector.broadcast %84 : vector<16x1xf32> to vector<16x4xf32>
    %86 = vector.broadcast %cst_34 : f32 to vector<16x4xf32>
    %87 = arith.select %83, %85, %86 : vector<16x4xi1>, vector<16x4xf32>
    %88 = arith.addf %81, %87 : vector<16x4xf32>
    %c3_i32 = arith.constant 3 : i32
    %89 = vector.broadcast %c3_i32 : i32 to vector<16x4xi32>
    %90 = arith.cmpi eq, %68, %89 : vector<16x4xi32>
    %cst_35 = arith.constant 0.000000e+00 : f32
    %91 = vector.shape_cast %67 : vector<16x1xf32> to vector<16x1xf32>
    %92 = vector.broadcast %91 : vector<16x1xf32> to vector<16x4xf32>
    %93 = vector.broadcast %cst_35 : f32 to vector<16x4xf32>
    %94 = arith.select %90, %92, %93 : vector<16x4xi1>, vector<16x4xf32>
    %95 = arith.addf %88, %94 : vector<16x4xf32>
    %c0_36 = arith.constant 0 : index
    %c0_37 = arith.constant 0 : index
    %96 = vector.load %arg4[%c0_36, %c0_37] : memref<1x16xf32, #tpu.memory_space<vmem>>, vector<1x16xf32>
    %cst_38 = arith.constant dense<0.000000e+00> : vector<1x4xf32>
    %97 = tpu.matmul %96, %95, %cst_38 {dimension_numbers = #tpu.dot_dimension_numbers<[1], [0], [0], [1], [0, 0, 1, 1], [], []>} : vector<1x16xf32>, vector<16x4xf32>, vector<1x4xf32> -> vector<1x4xf32>
    %98 = vector.extract_strided_slice %97 {offsets = [0, 0], sizes = [1, 1], strides = [1, 1]} : vector<1x4xf32> to vector<1x1xf32>
    %99 = vector.extract_strided_slice %97 {offsets = [0, 1], sizes = [1, 1], strides = [1, 1]} : vector<1x4xf32> to vector<1x1xf32>
    %100 = vector.extract_strided_slice %97 {offsets = [0, 2], sizes = [1, 1], strides = [1, 1]} : vector<1x4xf32> to vector<1x1xf32>
    %101 = vector.extract_strided_slice %97 {offsets = [0, 3], sizes = [1, 1], strides = [1, 1]} : vector<1x4xf32> to vector<1x1xf32>
    %cst_39 = arith.constant 1.000000e+00 : f32
    %102 = vector.broadcast %cst_39 : f32 to vector<1x1xf32>
    %103 = arith.maximumf %100, %102 : vector<1x1xf32>
    %104 = arith.divf %98, %103 : vector<1x1xf32>
    %cst_40 = arith.constant 1.000000e+00 : f32
    %105 = vector.broadcast %cst_40 : f32 to vector<1x1xf32>
    %106 = arith.maximumf %101, %105 : vector<1x1xf32>
    %107 = arith.divf %99, %106 : vector<1x1xf32>
    %108 = arith.addf %104, %107 : vector<1x1xf32>
    %109 = tpu.iota {dimensions = array<i32: 1>} : vector<1x128xi32>
    %c0_i32_41 = arith.constant 0 : i32
    %110 = vector.broadcast %c0_i32_41 : i32 to vector<1x128xi32>
    %111 = arith.cmpi eq, %109, %110 : vector<1x128xi32>
    %cst_42 = arith.constant 0.000000e+00 : f32
    %112 = vector.shape_cast %108 : vector<1x1xf32> to vector<1x1xf32>
    %113 = vector.broadcast %112 : vector<1x1xf32> to vector<1x128xf32>
    %114 = vector.broadcast %cst_42 : f32 to vector<1x128xf32>
    %115 = arith.select %111, %113, %114 : vector<1x128xi1>, vector<1x128xf32>
    %c1_i32_43 = arith.constant 1 : i32
    %116 = vector.broadcast %c1_i32_43 : i32 to vector<1x128xi32>
    %117 = arith.cmpi eq, %109, %116 : vector<1x128xi32>
    %cst_44 = arith.constant 0.000000e+00 : f32
    %118 = vector.shape_cast %100 : vector<1x1xf32> to vector<1x1xf32>
    %119 = vector.broadcast %118 : vector<1x1xf32> to vector<1x128xf32>
    %120 = vector.broadcast %cst_44 : f32 to vector<1x128xf32>
    %121 = arith.select %117, %119, %120 : vector<1x128xi1>, vector<1x128xf32>
    %122 = arith.addf %115, %121 : vector<1x128xf32>
    %c2_i32_45 = arith.constant 2 : i32
    %123 = vector.broadcast %c2_i32_45 : i32 to vector<1x128xi32>
    %124 = arith.cmpi eq, %109, %123 : vector<1x128xi32>
    %cst_46 = arith.constant 0.000000e+00 : f32
    %125 = vector.shape_cast %101 : vector<1x1xf32> to vector<1x1xf32>
    %126 = vector.broadcast %125 : vector<1x1xf32> to vector<1x128xf32>
    %127 = vector.broadcast %cst_46 : f32 to vector<1x128xf32>
    %128 = arith.select %124, %126, %127 : vector<1x128xi1>, vector<1x128xf32>
    %129 = arith.addf %122, %128 : vector<1x128xf32>
    %c0_47 = arith.constant 0 : index
    %c0_48 = arith.constant 0 : index
    %c0_49 = arith.constant 0 : index
    %130 = vector.load %arg5[%c0_47, %c0_48, %c0_49] : memref<1x1x128xf32, #tpu.memory_space<vmem>>, vector<1x1x128xf32>
    %131 = vector.shape_cast %130 : vector<1x1x128xf32> to vector<1x128xf32>
    %132 = vector.shape_cast %129 : vector<1x128xf32> to vector<1x1x128xf32>
    tpu.vector_store %arg5[%c0_47, %c0_48, %c0_49], %132 {strides = array<i32>} : memref<1x1x128xf32, #tpu.memory_space<vmem>>, vector<1x1x128xf32>,
    return
  }
  func.func @transform_0(%arg0: i32) -> (i32, i32, i32) {
    %c0_i32 = arith.constant 0 : i32
    %c0_i32_0 = arith.constant 0 : i32
    %c0_i32_1 = arith.constant 0 : i32
    return %arg0, %c0_i32, %c0_i32_0 : i32, i32, i32
  }
  func.func @transform_1(%arg0: i32) -> (i32, i32, i32) {
    %c0_i32 = arith.constant 0 : i32
    %c0_i32_0 = arith.constant 0 : i32
    %c0_i32_1 = arith.constant 0 : i32
    return %arg0, %c0_i32, %c0_i32_0 : i32, i32, i32
  }
  func.func @transform_2(%arg0: i32) -> (i32, i32, i32) {
    %c0_i32 = arith.constant 0 : i32
    %c0_i32_0 = arith.constant 0 : i32
    %c0_i32_1 = arith.constant 0 : i32
    return %arg0, %c0_i32, %c0_i32_0 : i32, i32, i32
  }
  func.func @transform_3(%arg0: i32) -> (i32, i32) {
    %c0_i32 = arith.constant 0 : i32
    %c0_i32_0 = arith.constant 0 : i32
    %c0_i32_1 = arith.constant 0 : i32
    return %c0_i32, %c0_i32_0 : i32, i32
  }
  func.func @transform_4(%arg0: i32) -> (i32, i32, i32) {
    %c0_i32 = arith.constant 0 : i32
    %c0_i32_0 = arith.constant 0 : i32
    %c0_i32_1 = arith.constant 0 : i32
    return %arg0, %c0_i32, %c0_i32_0 : i32, i32, i32
  }
}

</mosaic_0001>

<llo_original>
// kernel: jde_loss.1
$region0: #{jde_loss.1}
  #allocation0 [shape = 'u32[]', space=smem, size = 0x4, offset = 0x4, fixed_abs, tag = 'smem constant byte address 0x4 - core index']
  #allocation1 [shape = 'u32[144,128]{1,0:T(1,128)}', space=vmem, size = 0x12000, scoped, tag = 'internal scratch']
  %s0 = inlined_call_operand.vmem [shape: bf16[2,16,128], index: 0, kind: input, shape index: {}]
  %s1 = inlined_call_operand.vmem [shape: s32[2,16,2], index: 1, kind: input, shape index: {}]
  %s2 = inlined_call_operand.vmem [shape: s32[2,2,16], index: 2, kind: input, shape index: {}]
  %s3 = inlined_call_operand.vmem [shape: f32[1,16], index: 3, kind: input, shape index: {}]
  %s4 = inlined_call_operand.vmem [shape: f32[2,1,128], index: 4, kind: output, shape index: {}]
  %s5 = sld [smem:[#allocation0]]
  $region49: #{jde_loss.1} parent=0
    _
  %s7 = ssub.s32 1, %s5
  %s8 = scalar_select 0, %s7, %s5
  loop: start=0, step=1, limit=4
  $region2: #{jde_loss.1} parent=0 // loop_pre_header
    _
  $region3: #{jde_loss.1} parent=0 // loop_header
    %s10 = sphi 0, %s14
    %p11 = scmp.ge.s32.totalorder %s10, 4
    %s20 = sphi 0, %s22
    %s23 = sphi 0, %s20
    %s24 = sphi 0, %s23
    %s40 = sphi 0, %s24
    %s46 = sphi 0, %s48
    %s49 = sphi 0, %s46
    %s50 = sphi 0, %s49
    %s66 = sphi 0, %s50
    %s72 = sphi 0, %s74
    %s75 = sphi 0, %s72
    %s76 = sphi 0, %s75
    %s92 = sphi 0, %s76
    %s96 = sphi 0, %s96
    %s98 = sphi 0, %s96
    %s99 = sphi 0, %s98
    %s113 = sphi 0, %s99
    %s119 = sphi 0, %s121
    %s122 = sphi 0, %s119
    %s123 = sphi 0, %s122
    %s139 = sphi 0, %s123
  $region4: #{jde_loss.1} parent=0 // loop_header_branch
    %13 = sbr.rel (%p11) target = $region8
  $region5: #{jde_loss.1} parent=0 // loop_body
    %s15 = ssub.s32 %s10, 1
    %s16 = ssub.s32 %s10, 2
    %s17 = sadd.s32 %s10, 1
    %s18 = ssub.s32 %s10, %s17
    %p19 = scmp.eq.s32.totalorder %s18, 0
    %s21 = sadd.s32 %s20, 1
    %s22 = scalar_select %p19, %s20, %s21
    %p25 = pneg %p19
    %p26 = scmp.eq.s32.totalorder %s10, 1
    %p27 = por %p25, %p26
    %p28 = scmp.ne.s32.totalorder %s20, %s23
    %p29 = scmp.eq.s32.totalorder %s10, 0
    %p30 = por %p28, %p29
    %p31 = scmp.ne.s32.totalorder %s20, %s23
    %p32 = scmp.eq.s32.totalorder %s15, 1
    %p33 = por %p31, %p32
    %p34 = scmp.ne.s32.totalorder %s23, %s24
    %p35 = scmp.eq.s32.totalorder %s15, 0
    %p36 = por %p34, %p35
    %p37 = scmp.ne.s32.totalorder %s23, %s24
    %p38 = scmp.eq.s32.totalorder %s16, 1
    %p39 = por %p37, %p38
    %p41 = scmp.ne.s32.totalorder %s24, %s40
    %p42 = scmp.eq.s32.totalorder %s16, 0
    %p43 = por %p41, %p42
    %s44 = ssub.s32 %s10, %s17
    %p45 = scmp.eq.s32.totalorder %s44, 0
    %s47 = sadd.s32 %s46, 1
    %s48 = scalar_select %p45, %s46, %s47
    %p51 = pneg %p45
    %p52 = scmp.eq.s32.totalorder %s10, 1
    %p53 = por %p51, %p52
    %p54 = scmp.ne.s32.totalorder %s46, %s49
    %p55 = scmp.eq.s32.totalorder %s10, 0
    %p56 = por %p54, %p55
    %p57 = scmp.ne.s32.totalorder %s46, %s49
    %p58 = scmp.eq.s32.totalorder %s15, 1
    %p59 = por %p57, %p58
    %p60 = scmp.ne.s32.totalorder %s49, %s50
    %p61 = scmp.eq.s32.totalorder %s15, 0
    %p62 = por %p60, %p61
    %p63 = scmp.ne.s32.totalorder %s49, %s50
    %p64 = scmp.eq.s32.totalorder %s16, 1
    %p65 = por %p63, %p64
    %p67 = scmp.ne.s32.totalorder %s50, %s66
    %p68 = scmp.eq.s32.totalorder %s16, 0
    %p69 = por %p67, %p68
    %s70 = ssub.s32 %s10, %s17
    %p71 = scmp.eq.s32.totalorder %s70, 0
    %s73 = sadd.s32 %s72, 1
    %s74 = scalar_select %p71, %s72, %s73
    %p77 = pneg %p71
    %p78 = scmp.eq.s32.totalorder %s10, 1
    %p79 = por %p77, %p78
    %p80 = scmp.ne.s32.totalorder %s72, %s75
    %p81 = scmp.eq.s32.totalorder %s10, 0
    %p82 = por %p80, %p81
    %p83 = scmp.ne.s32.totalorder %s72, %s75
    %p84 = scmp.eq.s32.totalorder %s15, 1
    %p85 = por %p83, %p84
    %p86 = scmp.ne.s32.totalorder %s75, %s76
    %p87 = scmp.eq.s32.totalorder %s15, 0
    %p88 = por %p86, %p87
    %p89 = scmp.ne.s32.totalorder %s75, %s76
    %p90 = scmp.eq.s32.totalorder %s16, 1
    %p91 = por %p89, %p90
    %p93 = scmp.ne.s32.totalorder %s76, %s92
    %p94 = scmp.eq.s32.totalorder %s16, 0
    %p95 = por %p93, %p94
    %s97 = sadd.s32 %s96, 1
    %p100 = scmp.eq.s32.totalorder %s10, 1
    %p101 = scmp.ne.s32.totalorder %s96, %s98
    %p102 = scmp.eq.s32.totalorder %s10, 0
    %p103 = por %p101, %p102
    %p104 = scmp.ne.s32.totalorder %s96, %s98
    %p105 = scmp.eq.s32.totalorder %s15, 1
    %p106 = por %p104, %p105
    %p107 = scmp.ne.s32.totalorder %s98, %s99
    %p108 = scmp.eq.s32.totalorder %s15, 0
    %p109 = por %p107, %p108
    %p110 = scmp.ne.s32.totalorder %s98, %s99
    %p111 = scmp.eq.s32.totalorder %s16, 1
    %p112 = por %p110, %p111
    %p114 = scmp.ne.s32.totalorder %s99, %s113
    %p115 = scmp.eq.s32.totalorder %s16, 0
    %p116 = por %p114, %p115
    %s117 = ssub.s32 %s10, %s17
    %p118 = scmp.eq.s32.totalorder %s117, 0
    %s120 = sadd.s32 %s119, 1
    %s121 = scalar_select %p118, %s119, %s120
    %p124 = pneg %p118
    %p125 = scmp.eq.s32.totalorder %s10, 1
    %p126 = por %p124, %p125
    %p127 = scmp.ne.s32.totalorder %s119, %s122
    %p128 = scmp.eq.s32.totalorder %s10, 0
    %p129 = por %p127, %p128
    %p130 = scmp.ne.s32.totalorder %s119, %s122
    %p131 = scmp.eq.s32.totalorder %s15, 1
    %p132 = por %p130, %p131
    %p133 = scmp.ne.s32.totalorder %s122, %s123
    %p134 = scmp.eq.s32.totalorder %s15, 0
    %p135 = por %p133, %p134
    %p136 = scmp.ne.s32.totalorder %s122, %s123
    %p137 = scmp.eq.s32.totalorder %s16, 1
    %p138 = por %p136, %p137
    %p140 = scmp.ne.s32.totalorder %s123, %s139
    %p141 = scmp.eq.s32.totalorder %s16, 0
    %p142 = por %p140, %p141
    %p143 = scmp.le.s32.totalorder 1, %s10
    %p144 = scmp.lt.s32.totalorder %s10, 3
    %p145 = pnand %p143, %p144
    %p146 = pneg %p145
    // Predicated region
    $region9: #{jde_loss.1} parent=5 // pred_check
      _
    $region10: #{jde_loss.1} parent=5 // pred_check_branch
      %148 = sbr.rel (%p145) target = $region12
    $region11: #{jde_loss.1} parent=5 // pred_region
      %s149 = ssub.s32 %s10, 1
      // Predicated region
      $region13: #{jde_loss.1} parent=11 // pred_check
        %p150 = pneg %p109
      $region14: #{jde_loss.1} parent=11 // pred_check_branch
        %152 = sbr.rel (%p150) target = $region16
      $region15: #{jde_loss.1} parent=11 // pred_region
        _
      $region16: #{jde_loss.1} parent=11 // pred_fallthru
        _
    $region12: #{jde_loss.1} parent=5 // pred_fallthru
      _
    %p153 = scmp.lt.s32.totalorder %s10, 2
    // Predicated region
    $region17: #{jde_loss.1} parent=5 // pred_check
      %p154 = pneg %p153
    $region18: #{jde_loss.1} parent=5 // pred_check_branch
      %156 = sbr.rel (%p154) target = $region20
    $region19: #{jde_loss.1} parent=5 // pred_region
      // Predicated region
      $region21: #{jde_loss.1} parent=19 // pred_check
        %p157 = pneg %p30
      $region22: #{jde_loss.1} parent=19 // pred_check_branch
        %159 = sbr.rel (%p157) target = $region24
      $region23: #{jde_loss.1} parent=19 // pred_region
        %p160 = scmp.lt.s32.totalorder %s10, 1
        %s161 = scalar_select %p160, %s10, 1
        %s162 = smul.addr %s161, 2
        %s163 = smul.addr %s162, 4
        %s164 = scalar_lea.vmem %s0, %s163
      $region24: #{jde_loss.1} parent=19 // pred_fallthru
        _
      // Predicated region
      $region25: #{jde_loss.1} parent=19 // pred_check
        %p165 = pneg %p56
      $region26: #{jde_loss.1} parent=19 // pred_check_branch
        %167 = sbr.rel (%p165) target = $region28
      $region27: #{jde_loss.1} parent=19 // pred_region
        %p168 = scmp.lt.s32.totalorder %s10, 1
        %s169 = scalar_select %p168, %s10, 1
        %s170 = smul.addr %s169, 2
        %s171 = smul.addr %s170, 8
        %s172 = scalar_lea.vmem %s1, %s171
      $region28: #{jde_loss.1} parent=19 // pred_fallthru
        _
      // Predicated region
      $region29: #{jde_loss.1} parent=19 // pred_check
        %p173 = pneg %p82
      $region30: #{jde_loss.1} parent=19 // pred_check_branch
        %175 = sbr.rel (%p173) target = $region32
      $region31: #{jde_loss.1} parent=19 // pred_region
        %p176 = scmp.lt.s32.totalorder %s10, 1
        %s177 = scalar_select %p176, %s10, 1
        %s178 = smul.addr %s177, 2
        %s179 = scalar_lea.vmem %s2, %s178
      $region32: #{jde_loss.1} parent=19 // pred_fallthru
        _
    $region20: #{jde_loss.1} parent=5 // pred_fallthru
      _
    %p180 = scmp.le.s32.totalorder 1, %s10
    %p181 = scmp.lt.s32.totalorder %s10, 3
    %p182 = pnand %p180, %p181
    %p183 = pneg %p182
    // Predicated region
    $region33: #{jde_loss.1} parent=5 // pred_check
      _
    $region34: #{jde_loss.1} parent=5 // pred_check_branch
      %185 = sbr.rel (%p182) target = $region36
    $region35: #{jde_loss.1} parent=5 // pred_region
      %s186 = ssub.s32 %s10, 1
      %p187 = scmp.lt.s32.totalorder %s15, 1
      %s188 = scalar_select %p187, %s15, 1
      %s189 = smul.addr %s188, 2
      %s190 = smul.addr %s189, 4
      %s191 = scalar_lea.vmem %s0, %s190
      %p192 = pneg %p36
      %p193 = pneg %p33
      %p194 = scmp.lt.s32.totalorder %s15, 1
      %s195 = scalar_select %p194, %s15, 1
      %s196 = smul.addr %s195, 2
      %s197 = smul.addr %s196, 8
      %s198 = scalar_lea.vmem %s1, %s197
      %p199 = pneg %p62
      %p200 = pneg %p59
      %p201 = scmp.lt.s32.totalorder %s15, 1
      %s202 = scalar_select %p201, %s15, 1
      %s203 = smul.addr %s202, 2
      %s204 = scalar_lea.vmem %s2, %s203
      %p205 = pneg %p88
      %p206 = pneg %p85
      %p207 = pneg %p109
      %p208 = pneg %p106
      %p209 = pneg %p135
      %p210 = pneg %p132
      %p211 = scmp.lt.s32.totalorder %s15, 1
      %s212 = scalar_select %p211, %s15, 1
      %s213 = scalar_lea.vmem %s4, %s212
      %p214 = scmp.lt.s32.totalorder %s15, 1
      %s215 = scalar_select %p214, %s15, 1
      %s216 = smul.addr %s215, 2
      %s217 = smul.addr %s216, 4
      %s218 = scalar_lea.vmem %s0, %s217
      %p219 = scmp.lt.s32.totalorder %s15, 1
      %s220 = scalar_select %p219, %s15, 1
      %s221 = smul.addr %s220, 2
      %s222 = smul.addr %s221, 8
      %s223 = scalar_lea.vmem %s1, %s222
      %p224 = scmp.lt.s32.totalorder %s15, 1
      %s225 = scalar_select %p224, %s15, 1
      %s226 = smul.addr %s225, 2
      %s227 = scalar_lea.vmem %s2, %s226
      %p228 = scmp.lt.s32.totalorder %s15, 1
      %s229 = scalar_select %p228, %s15, 1
      %s230 = scalar_lea.vmem %s4, %s229
      %v232 = vld [vmem:[%s218] sm:$0xf]
      %v233 = vld [vmem:[%s218 + $0x4] sm:$0xf]
      %v234 = vunpack.c.l.bf16 %v232
      %v235 = vunpack.c.l.bf16 %v233
      %v236 = vmul.f32 %v234, %v234
      %v237 = vmul.f32 %v235, %v235
      %238 = vadd.xlane.f32.xlu0 %v236
      %v239 = vpop.xlane.xlu0 %238
      %240 = vadd.xlane.f32.xlu0 %v237
      %v241 = vpop.xlane.xlu0 %240
      %v242 = vadd.f32 %v239, 1e-12
      %v243 = vadd.f32 %v241, 1e-12
      %v244 = vrsqrt.pop %v242
      %v245 = vrsqrt.pop %v243
      %v246 = vmul.f32 %v234, %v244
      %v247 = vmul.f32 %v235, %v245
      %v248 = vpack.c.bf16 %v247, %v246
      %249 = vmatprep.subr.bf16.mxu0 0
      %250 = vmatpush1.bf16.xpose.msra.mxu0 %v248
      %251 = vmatprep.subr.bf16.mxu0 0
      %252 = vmatpush1.bf16.xpose.msra.mxu0 0
      %253 = vmatprep.subr.bf16.mxu0 0
      %254 = vmatpush1.bf16.xpose.msra.mxu0 0
      %255 = vmatprep.subr.bf16.mxu0 0
      %256 = vmatpush1.bf16.xpose.msra.mxu0 0
      %257 = vmatprep.subr.bf16.mxu0 0
      %258 = vmatpush1.bf16.xpose.msra.mxu0 0
      %259 = vmatprep.subr.bf16.mxu0 0
      %260 = vmatpush1.bf16.xpose.msra.mxu0 0
      %261 = vmatprep.subr.bf16.mxu0 0
      %262 = vmatpush1.bf16.xpose.msra.mxu0 0
      %263 = vmatprep.subr.bf16.mxu0 0
      %264 = vmatpush1.bf16.xpose.msra.mxu0 0
      %265 = vmatprep.subr.bf16.mxu0 0
      %266 = vmatpush1.bf16.xpose.msra.mxu0 0
      %267 = vmatprep.subr.bf16.mxu0 0
      %268 = vmatpush1.bf16.xpose.msra.mxu0 0
      %269 = vmatprep.subr.bf16.mxu0 0
      %270 = vmatpush1.bf16.xpose.msra.mxu0 0
      %271 = vmatprep.subr.bf16.mxu0 0
      %272 = vmatpush1.bf16.xpose.msra.mxu0 0
      %273 = vmatprep.subr.bf16.mxu0 0
      %274 = vmatpush1.bf16.xpose.msra.mxu0 0
      %275 = vmatprep.subr.bf16.mxu0 0
      %276 = vmatpush1.bf16.xpose.msra.mxu0 0
      %277 = vmatprep.subr.bf16.mxu0 0
      %278 = vmatpush1.bf16.xpose.msra.mxu0 0
      %279 = vmatprep.subr.bf16.mxu0 0
      %280 = vmatpush1.bf16.xpose.msra.mxu0 0
      %281 = vmatprep.mubr.bf16.mxu0 0
      %282 = vmatmul.mubr.bf16.gmra.mrb[0].mxu0 %v248
      %v283 = vpop.f32.mrb[0].mxu0
      %v284 = vadd.f32 0.0, %v283
      %v285 = vpop.f32.mrb[0].mxu0
      %v286 = vpop.f32.mrb[0].mxu0
      %v287 = vadd.f32 0.0, %v286
      %v288 = vpop.f32.mrb[0].mxu0
      %289 = vdwg.mxu0
      %v290 = vmul.f32 %v284, 2.0
      %v291 = vmul.f32 %v287, 2.0
      %v292 = vsub.f32 2.0, %v290
      %v293 = vsub.f32 2.0, %v291
      %v294 = vmax.f32 %v292, 0.0
      %v295 = vmax.f32 %v293, 0.0
      %v296 = vrsqrt.pop %v294
      %v297 = vmul.f32 %v294, %v296
      %vm298 = vcmp.eq.f32.partialorder %v294, inf
      %v299 = vsel %vm298, %v294, %v297
      %vm300 = vcmp.eq.f32.partialorder %v294, 0.0
      %v301 = vand.u32 %v294, 2147483648
      %v302 = vsel %vm300, %v301, %v299
      %v303 = vrsqrt.pop %v295
      %v304 = vmul.f32 %v295, %v303
      %vm305 = vcmp.eq.f32.partialorder %v295, inf
      %v306 = vsel %vm305, %v295, %v304
      %vm307 = vcmp.eq.f32.partialorder %v295, 0.0
      %v308 = vand.u32 %v295, 2147483648
      %v309 = vsel %vm307, %v308, %v306
      %v310 = vld [vmem:[%s223] sm:$0xff]
      %v311 = vld [vmem:[%s223 + $0x8] sm:$0xff]
      %v312 = vld [vmem:[%s227] sm:$0x1]
      %v313 = vld [vmem:[%s227 + $0x1] sm:$0x1]
      %314 = vset.pattern.permute.xlu0 0
      %315 = vperm.xlu0 %314, %v310
      %v316 = vpop.permute.xlu0 %315
      %317 = vset.pattern.permute.xlu0 0
      %318 = vperm.xlu0 %317, %v311
      %v319 = vpop.permute.xlu0 %318
      %v320 = vlaneseq
      %v321 = vshrl.u32 %v320, 7
      %v322 = vsub.s32 0, %v321
      %v323 = vrot.slane %v312, %v322
      %vm324 = vcmp.eq.s32.totalorder %v316, %v323
      %vm325 = vcmp.eq.s32.totalorder %v319, %v323
      %326 = vset.pattern.permute.xlu0 1
      %327 = vperm.xlu0 %326, %v310
      %v328 = vpop.permute.xlu0 %327
      %329 = vset.pattern.permute.xlu0 1
      %330 = vperm.xlu0 %329, %v311
      %v331 = vpop.permute.xlu0 %330
      %v332 = vlaneseq
      %v333 = vshrl.u32 %v332, 7
      %v334 = vsub.s32 0, %v333
      %v335 = vrot.slane %v313, %v334
      %vm336 = vcmp.eq.s32.totalorder %v328, %v335
      %vm337 = vcmp.eq.s32.totalorder %v331, %v335
      %v338 = vlaneseq
      %v339 = vshrl.u32 %v338, 7
      %v340 = vadd.s32 %v339, 8
      %v341 = vlaneseq
      %v342 = vand.u32 %v341, 127
      %vm343 = vcmp.ne.s32.totalorder %v339, %v342
      %vm344 = vcmp.ne.s32.totalorder %v340, %v342
      %vm345 = vmand %vm324, %vm336
      %vm346 = vmand %vm325, %vm337
      %vm347 = vmand %vm345, %vm343
      %vm348 = vmand %vm346, %vm344
      %vm349 = vcmp.gt.f32.partialorder %v294, 0.04
      %vm350 = vcmp.gt.f32.partialorder %v295, 0.04
      %vm351 = vmand %vm347, %vm349
      %vm352 = vmand %vm348, %vm350
      %vm353 = vmxor %vm336, 1
      %vm354 = vmxor %vm337, 1
      %vm355 = vmand %vm324, %vm353
      %vm356 = vmand %vm325, %vm354
      %vm357 = vcmp.lt.f32.partialorder %v294, 0.64
      %vm358 = vcmp.lt.f32.partialorder %v295, 0.64
      %vm359 = vmand %vm355, %vm357
      %vm360 = vmand %vm356, %vm358
      %v361 = vsel %vm351, %v302, 0.0
      %v362 = vsel %vm352, %v309, 0.0
      %vm363 = vcmask 130048
      %v364 = vsel %vm363, %v361, 0.0
      %365 = vadd.xlane.f32.xlu0 %v364
      %v366 = vpop.xlane.xlu0 %365
      %v367 = vsel %vm363, %v362, 0.0
      %368 = vadd.xlane.f32.xlu0 %v367
      %v369 = vpop.xlane.xlu0 %368
      %v370 = vsub.f32 1.0, %v302
      %v371 = vsub.f32 1.0, %v309
      %v372 = vsel %vm359, %v370, 0.0
      %v373 = vsel %vm360, %v371, 0.0
      %v374 = vsel %vm363, %v372, 0.0
      %375 = vadd.xlane.f32.xlu0 %v374
      %v376 = vpop.xlane.xlu0 %375
      %v377 = vsel %vm363, %v373, 0.0
      %378 = vadd.xlane.f32.xlu0 %v377
      %v379 = vpop.xlane.xlu0 %378
      %v380 = vsel %vm351, 1.0, 0.0
      %v381 = vsel %vm352, 1.0, 0.0
      %v382 = vsel %vm363, %v380, 0.0
      %383 = vadd.xlane.f32.xlu0 %v382
      %v384 = vpop.xlane.xlu0 %383
      %v385 = vsel %vm363, %v381, 0.0
      %386 = vadd.xlane.f32.xlu0 %v385
      %v387 = vpop.xlane.xlu0 %386
      %v388 = vsel %vm359, 1.0, 0.0
      %v389 = vsel %vm360, 1.0, 0.0
      %v390 = vsel %vm363, %v388, 0.0
      %391 = vadd.xlane.f32.xlu0 %v390
      %v392 = vpop.xlane.xlu0 %391
      %v393 = vsel %vm363, %v389, 0.0
      %394 = vadd.xlane.f32.xlu0 %v393
      %v395 = vpop.xlane.xlu0 %394
      %vm396 = vcmp.eq.s32.totalorder %v342, 0
      %v397 = vsel %vm396, %v366, 0.0
      %v398 = vsel %vm396, %v369, 0.0
      %vm399 = vcmp.eq.s32.totalorder %v342, 1
      %v400 = vsel %vm399, %v376, 0.0
      %v401 = vsel %vm399, %v379, 0.0
      %v402 = vadd.f32 %v397, %v400
      %v403 = vadd.f32 %v398, %v401
      %vm404 = vcmp.eq.s32.totalorder %v342, 2
      %v405 = vsel %vm404, %v384, 0.0
      %v406 = vsel %vm404, %v387, 0.0
      %v407 = vadd.f32 %v402, %v405
      %v408 = vadd.f32 %v403, %v406
      %vm409 = vcmp.eq.s32.totalorder %v342, 3
      %v410 = vsel %vm409, %v392, 0.0
      %v411 = vsel %vm409, %v395, 0.0
      %v412 = vadd.f32 %v407, %v410
      %v413 = vadd.f32 %v408, %v411
      %v414 = vld [vmem:[%s3] sm:$0x1]
      %v416 = vsel %vm363, %v414, 0
      %418 = vmatprep.subr.mxu0 0.0
      %419 = vmatpush1.msra.mxu0 %v412
      %420 = vmatprep.subr.mxu0 0.0
      %421 = vmatpush1.msra.mxu0 %v413
      %422 = vmatprep.subr.mxu0 0.0
      %423 = vmatpush1.msra.mxu0 0.0
      %424 = vmatprep.subr.mxu0 0.0
      %425 = vmatpush1.msra.mxu0 0.0
      %426 = vmatprep.subr.mxu0 0.0
      %427 = vmatpush1.msra.mxu0 0.0
      %428 = vmatprep.subr.mxu0 0.0
      %429 = vmatpush1.msra.mxu0 0.0
      %430 = vmatprep.subr.mxu0 0.0
      %431 = vmatpush1.msra.mxu0 0.0
      %432 = vmatprep.subr.mxu0 0.0
      %433 = vmatpush1.msra.mxu0 0.0
      %434 = vmatprep.subr.mxu0 0.0
      %435 = vmatpush1.msra.mxu0 0.0
      %436 = vmatprep.subr.mxu0 0.0
      %437 = vmatpush1.msra.mxu0 0.0
      %438 = vmatprep.subr.mxu0 0.0
      %439 = vmatpush1.msra.mxu0 0.0
      %440 = vmatprep.subr.mxu0 0.0
      %441 = vmatpush1.msra.mxu0 0.0
      %442 = vmatprep.subr.mxu0 0.0
      %443 = vmatpush1.msra.mxu0 0.0
      %444 = vmatprep.subr.mxu0 0.0
      %445 = vmatpush1.msra.mxu0 0.0
      %446 = vmatprep.subr.mxu0 0.0
      %447 = vmatpush1.msra.mxu0 0.0
      %448 = vmatprep.subr.mxu0 0.0
      %449 = vmatpush1.msra.mxu0 0.0
      %450 = vmatprep.subr.mxu0 0.0
      %451 = vmatpush1.msra.mxu0 0.0
      %452 = vmatprep.subr.mxu0 0.0
      %453 = vmatpush1.msra.mxu0 0.0
      %454 = vmatprep.subr.mxu0 0.0
      %455 = vmatpush1.msra.mxu0 0.0
      %456 = vmatprep.subr.mxu0 0.0
      %457 = vmatpush1.msra.mxu0 0.0
      %458 = vmatprep.subr.mxu0 0.0
      %459 = vmatpush1.msra.mxu0 0.0
      %460 = vmatprep.subr.mxu0 0.0
      %461 = vmatpush1.msra.mxu0 0.0
      %462 = vmatprep.subr.mxu0 0.0
      %463 = vmatpush1.msra.mxu0 0.0
      %464 = vmatprep.subr.mxu0 0.0
      %465 = vmatpush1.msra.mxu0 0.0
      %466 = vmatprep.subr.mxu0 0.0
      %467 = vmatpush1.msra.mxu0 0.0
      %468 = vmatprep.subr.mxu0 0.0
      %469 = vmatpush1.msra.mxu0 0.0
      %470 = vmatprep.subr.mxu0 0.0
      %471 = vmatpush1.msra.mxu0 0.0
      %472 = vmatprep.subr.mxu0 0.0
      %473 = vmatpush1.msra.mxu0 0.0
      %474 = vmatprep.subr.mxu0 0.0
      %475 = vmatpush1.msra.mxu0 0.0
      %476 = vmatprep.subr.mxu0 0.0
      %477 = vmatpush1.msra.mxu0 0.0
      %478 = vmatprep.subr.mxu0 0.0
      %479 = vmatpush1.msra.mxu0 0.0
      %480 = vmatprep.subr.mxu0 0.0
      %481 = vmatpush1.msra.mxu0 0.0
      %482 = vmatprep.mubr.f32.mxu0 0.0
      %483 = vmatmul.mubr.f32.gmra.mrb[0].mxu0 %v416
      %v484 = vpop.f32.mrb[0].mxu0
      %v485 = vadd.f32 0.0, %v484
      %v486 = vpop.f32.mrb[0].mxu0
      %487 = vdwg.mxu0
      %v488 = vmax.f32 %v485, 1.0
      %490 = vrot.lane.b32.xlu0 %v488, 126
      %v491 = vpop.permute.xlu0 %490
      %v493 = vrcp.pop %v491
      %v494 = vmul.f32 %v485, %v493
      %496 = vrot.lane.b32.xlu0 %v494, 127
      %v497 = vpop.permute.xlu0 %496
      %v499 = vadd.f32 %v494, %v497
      %501 = vset.pattern.permute.xlu0 0
      %502 = vperm.xlu0 %501, %v499
      %v503 = vpop.permute.xlu0 %502
      %v505 = vsel %vm396, %v503, 0.0
      %507 = vset.pattern.permute.xlu0 2
      %508 = vperm.xlu0 %507, %v485
      %v509 = vpop.permute.xlu0 %508
      %v511 = vsel %vm399, %v509, 0.0
      %v512 = vadd.f32 %v505, %v511
      %513 = vset.pattern.permute.xlu0 3
      %514 = vperm.xlu0 %513, %v485
      %v515 = vpop.permute.xlu0 %514
      %v517 = vsel %vm404, %v515, 0.0
      %v518 = vadd.f32 %v512, %v517
      %519 = vst [vmem:[%s230] sm:$0x1] %v518
      %p520 = scmp.lt.s32.totalorder %s15, 1
      %s521 = scalar_select %p520, %s15, 1
      %s522 = scalar_lea.vmem %s4, %s521
      // Predicated region
      $region37: #{jde_loss.1} parent=35 // pred_check
        %p523 = pneg %p132
      $region38: #{jde_loss.1} parent=35 // pred_check_branch
        %525 = sbr.rel (%p523) target = $region40
      $region39: #{jde_loss.1} parent=35 // pred_region
        _
      $region40: #{jde_loss.1} parent=35 // pred_fallthru
        _
    $region36: #{jde_loss.1} parent=5 // pred_fallthru
      _
    %p526 = scmp.le.s32.totalorder 2, %s10
    // Predicated region
    $region41: #{jde_loss.1} parent=5 // pred_check
      %p527 = pneg %p526
    $region42: #{jde_loss.1} parent=5 // pred_check_branch
      %529 = sbr.rel (%p527) target = $region44
    $region43: #{jde_loss.1} parent=5 // pred_region
      %s530 = ssub.s32 %s10, 2
      // Predicated region
      $region45: #{jde_loss.1} parent=43 // pred_check
        %p531 = pneg %p138
      $region46: #{jde_loss.1} parent=43 // pred_check_branch
        %533 = sbr.rel (%p531) target = $region48
      $region47: #{jde_loss.1} parent=43 // pred_region
        %p534 = scmp.lt.s32.totalorder %s16, 1
        %s535 = scalar_select %p534, %s16, 1
        %s536 = scalar_lea.vmem %s4, %s535
      $region48: #{jde_loss.1} parent=43 // pred_fallthru
        _
    $region44: #{jde_loss.1} parent=5 // pred_fallthru
      _
  $region6: #{jde_loss.1} parent=0 // loop_footer
    %s14 = sadd.s32 1, %s10
  $region7: #{jde_loss.1} parent=0 // loop_footer_branch
    %9 = sbr.rel target = $region3
  $region8: #{jde_loss.1} parent=0 // loop_exit
    _

</llo_original>
